<compile_context>
chip_gen: v7x
topology: tpu7x:2x2x1
jax: 0.10.0
libtpu: 0.0.40
codegen_flags: <defaults>
</compile_context>

<pallas_src>
import jax
import jax.numpy as jnp
from jax.experimental import pallas as pl
from jax.experimental.pallas import tpu as pltpu

_HIDDEN = 64
_LANE = 128


def _round_up(x, m):
    return ((x + m - 1) // m) * m


# ---------------------------------------------------------------------------
# Pallas kernel:
#   h = relu(state @ W1a + next_state @ W1b + b1)   (concat fused via W1 split)
#   y = tanh(h @ W2 + b2)                           (wrap_action = tanh)
# Matmuls run in bf16 on the MXU with f32 accumulation; epilogue in f32.
# ---------------------------------------------------------------------------
def _curiosity_kernel(s_ref, ns_ref, w1a_ref, w1b_ref, b1_ref, w2_ref, b2_ref,
                      o_ref):
    h = jnp.dot(s_ref[...], w1a_ref[...], preferred_element_type=jnp.float32)
    h = h + jnp.dot(ns_ref[...], w1b_ref[...],
                    preferred_element_type=jnp.float32)
    h = jnp.maximum(h + b1_ref[...], 0.0)                          # f32 ReLU
    y = jnp.dot(h.astype(w2_ref.dtype), w2_ref[...],
                preferred_element_type=jnp.float32)
    o_ref[...] = jnp.tanh(y + b2_ref[...])                         # f32 tanh


def curiosity_forward(state, next_state, params, *, block_b=256):
    """CuriosityNN forward pass via a fused Pallas TPU kernel.

    state, next_state : [B, state_size * history_count] float32
    params            : dict from make_curiosity_params (noised, padded, split)
    returns           : [B, action_size] float32
    """
    w1a, w1b = params["w1a"], params["w1b"]
    b1, w2, b2 = params["b1"], params["w2"], params["b2"]
    A = params["action_size"]

    B, feat = state.shape
    Hp = w1a.shape[1]          # padded hidden (128)
    Ap = w2.shape[1]           # padded action lanes (multiple of 128)

    # bf16 activations halve input DMA bytes and use the bf16-native MXU.
    s = state.astype(jnp.bfloat16)
    ns = next_state.astype(jnp.bfloat16)

    # Batch tile selection:
    #  - large B: big tile (amortize grid-step overhead), ragged tail clipped
    #  - medium B: keep >=2 grid steps so v7x megacore gets both cores busy
    #  - tiny B: one full-batch block (block dim == array dim is always legal)
    if B > block_b:
        bb = block_b                              # multiple of 8
    elif B >= 16:
        bb = _round_up((B + 1) // 2, 8)           # >=2 grid steps, multiple of 8
    else:
        bb = B                                    # single full-batch block
    grid = (pl.cdiv(B, bb),)

    d_in = 2 * feat
    flops = 2 * B * (d_in * Hp + Hp * Ap)
    bytes_accessed = (B * d_in * 2                     # bf16 activations in
                      + (d_in * Hp + Hp * Ap) * 2      # bf16 weights
                      + (Hp + Ap) * 4                  # f32 biases
                      + B * Ap * 4)                    # f32 output
    cost = pl.CostEstimate(flops=flops,
                           transcendentals=B * Ap,
                           bytes_accessed=bytes_accessed)

    out = pl.pallas_call(
        _curiosity_kernel,
        out_shape=jax.ShapeDtypeStruct((B, Ap), jnp.float32),
        grid_spec=pltpu.PrefetchScalarGridSpec(
            num_scalar_prefetch=0,
            grid=grid,
            in_specs=[
                pl.BlockSpec((bb, feat), lambda i: (i, 0)),   # state tile
                pl.BlockSpec((bb, feat), lambda i: (i, 0)),   # next_state tile
                pl.BlockSpec((feat, Hp), lambda i: (0, 0)),   # W1a (resident)
                pl.BlockSpec((feat, Hp), lambda i: (0, 0)),   # W1b (resident)
                pl.BlockSpec((1, Hp), lambda i: (0, 0)),      # b1
                pl.BlockSpec((Hp, Ap), lambda i: (0, 0)),     # W2 (resident)
                pl.BlockSpec((1, Ap), lambda i: (0, 0)),      # b2
            ],
            out_specs=pl.BlockSpec((bb, Ap), lambda i: (i, 0)),
        ),
        compiler_params=pltpu.CompilerParams(
            dimension_semantics=("parallel",),
            vmem_limit_bytes=32 * 1024 * 1024,
        ),
        cost_estimate=cost,
    )(s, ns, w1a, w1b, b1, w2, b2)

    # drop zero-padded action lanes (rows were never padded host-side)
    return out[:, :A]


# ---------------------------------------------------------------------------
# Deterministic NoisyNet parameter construction (glue, plain JAX)
# ---------------------------------------------------------------------------
def _noisy_linear_params(key, fan_in, fan_out, sigma0=0.017):
    k_mu_w, k_mu_b, k_eps_in, k_eps_out = jax.random.split(key, 4)
    bound = 1.0 / jnp.sqrt(fan_in)
    w_mu = jax.random.uniform(k_mu_w, (fan_in, fan_out), jnp.float32, -bound, bound)
    b_mu = jax.random.uniform(k_mu_b, (1, fan_out), jnp.float32, -bound, bound)
    w_sigma = jnp.full((fan_in, fan_out), sigma0, jnp.float32)
    b_sigma = jnp.full((1, fan_out), sigma0, jnp.float32)

    # factorized Gaussian noise: f(x) = sign(x) * sqrt(|x|)
    f = lambda x: jnp.sign(x) * jnp.sqrt(jnp.abs(x))
    eps_in = f(jax.random.normal(k_eps_in, (fan_in,), jnp.float32))
    eps_out = f(jax.random.normal(k_eps_out, (fan_out,), jnp.float32))
    w_eps = jnp.outer(eps_in, eps_out)
    b_eps = eps_out[None, :]

    w = w_mu + w_sigma * w_eps
    b = b_mu + b_sigma * b_eps
    return w, b


def make_curiosity_params(key, state_size, action_size, history_count,
                          hidden=_HIDDEN):
    feat = state_size * history_count
    d_in = 2 * feat                              # concat(state, next_state)
    k1, k2 = jax.random.split(key)
    w1, b1 = _noisy_linear_params(k1, d_in, hidden)
    w2, b2 = _noisy_linear_params(k2, hidden, action_size)

    # lane-dense zero-padding: hidden -> 128, action -> multiple of 128
    Hp = _round_up(hidden, _LANE)
    Ap = _round_up(action_size, _LANE)
    w1p = jnp.pad(w1, ((0, 0), (0, Hp - hidden)))
    b1p = jnp.pad(b1, ((0, 0), (0, Hp - hidden)))
    w2p = jnp.pad(w2, ((0, Hp - hidden), (0, Ap - action_size)))
    b2p = jnp.pad(b2, ((0, 0), (0, Ap - action_size)))

    return {
        # W1 split so the concat is fused into the kernel (flow = [s, ns])
        "w1a": w1p[:feat].astype(jnp.bfloat16),
        "w1b": w1p[feat:].astype(jnp.bfloat16),
        "b1": b1p,                               # f32 bias
        "w2": w2p.astype(jnp.bfloat16),
        "b2": b2p,                               # f32 bias
        "action_size": action_size,
        # unpadded f32 originals for the reference check
        "ref": {"w1": w1, "b1": b1, "w2": w2, "b2": b2},
    }


# ---------------------------------------------------------------------------
# main
# ---------------------------------------------------------------------------
if __name__ == "__main__":
    B = 2
    state_size = 8
    history_count = 1
    action_size = 4

    key = jax.random.PRNGKey(0)
    k_param, k_s, k_ns = jax.random.split(key, 3)

    params = make_curiosity_params(k_param, state_size, action_size,
                                   history_count)

    feat = state_size * history_count
    state = jax.random.normal(k_s, (B, feat), jnp.float32)
    next_state = jax.random.normal(k_ns, (B, feat), jnp.float32)

    out = curiosity_forward(state, next_state, params)
    out = jax.block_until_ready(out)

    # reference in plain f32 JAX (unpadded, un-split weights)
    r = params["ref"]
    flow = jnp.concatenate([state, next_state], axis=1)
    h = jnp.maximum(flow @ r["w1"] + r["b1"], 0.0)
    ref = jnp.tanh(h @ r["w2"] + r["b2"])

    assert out.shape == (B, action_size)
    # bf16 matmuls with f32 accumulation -> loosened tolerance vs f32 reference
    assert jnp.allclose(out, ref, atol=2e-2), float(jnp.max(jnp.abs(out - ref)))

    print("KERNEL_OK")
</pallas_src>

<mosaic_0001>
module attributes {stable_mosaic.version = 11 : i64} {
  func.func @_curiosity_kernel(%arg0: i32, %arg1: memref<2x8xbf16, #tpu.memory_space<vmem>>, %arg2: memref<2x8xbf16, #tpu.memory_space<vmem>>, %arg3: memref<8x128xbf16, #tpu.memory_space<vmem>>, %arg4: memref<8x128xbf16, #tpu.memory_space<vmem>>, %arg5: memref<1x128xf32, #tpu.memory_space<vmem>>, %arg6: memref<128x128xbf16, #tpu.memory_space<vmem>>, %arg7: memref<1x128xf32, #tpu.memory_space<vmem>>, %arg8: memref<2x128xf32, #tpu.memory_space<vmem>>) attributes {dimension_semantics = [#tpu.dimension_semantics<parallel>], iteration_bounds = array<i64: 1>, scalar_prefetch = 0 : i64, scratch_operands = 0 : i64, tpu.core_type = #tpu.core_type<tc>, window_params = [{transform_indices = @transform_0, window_bounds = array<i64: 2, 8>}, {transform_indices = @transform_1, window_bounds = array<i64: 2, 8>}, {pipeline_mode = #tpu.pipeline_mode<synchronous>, transform_indices = @transform_2, window_bounds = array<i64: 8, 128>}, {pipeline_mode = #tpu.pipeline_mode<synchronous>, transform_indices = @transform_3, window_bounds = array<i64: 8, 128>}, {pipeline_mode = #tpu.pipeline_mode<synchronous>, transform_indices = @transform_4, window_bounds = array<i64: 1, 128>}, {pipeline_mode = #tpu.pipeline_mode<synchronous>, transform_indices = @transform_5, window_bounds = array<i64: 128, 128>}, {pipeline_mode = #tpu.pipeline_mode<synchronous>, transform_indices = @transform_6, window_bounds = array<i64: 1, 128>}, {transform_indices = @transform_7, window_bounds = array<i64: 2, 128>}]} {
    %c0 = arith.constant 0 : index
    %c0_0 = arith.constant 0 : index
    %0 = vector.load %arg1[%c0, %c0_0] : memref<2x8xbf16, #tpu.memory_space<vmem>>, vector<2x8xbf16>
    %c0_1 = arith.constant 0 : index
    %c0_2 = arith.constant 0 : index
    %1 = vector.load %arg3[%c0_1, %c0_2] : memref<8x128xbf16, #tpu.memory_space<vmem>>, vector<8x128xbf16>
    %cst = arith.constant dense<0.000000e+00> : vector<2x128xf32>
    %2 = tpu.matmul %0, %1, %cst {dimension_numbers = #tpu.dot_dimension_numbers<[1], [0], [0], [1], [0, 0, 1, 1], [], []>} : vector<2x8xbf16>, vector<8x128xbf16>, vector<2x128xf32> -> vector<2x128xf32>
    %c0_3 = arith.constant 0 : index
    %c0_4 = arith.constant 0 : index
    %3 = vector.load %arg2[%c0_3, %c0_4] : memref<2x8xbf16, #tpu.memory_space<vmem>>, vector<2x8xbf16>
    %c0_5 = arith.constant 0 : index
    %c0_6 = arith.constant 0 : index
    %4 = vector.load %arg4[%c0_5, %c0_6] : memref<8x128xbf16, #tpu.memory_space<vmem>>, vector<8x128xbf16>
    %cst_7 = arith.constant dense<0.000000e+00> : vector<2x128xf32>
    %5 = tpu.matmul %3, %4, %cst_7 {dimension_numbers = #tpu.dot_dimension_numbers<[1], [0], [0], [1], [0, 0, 1, 1], [], []>} : vector<2x8xbf16>, vector<8x128xbf16>, vector<2x128xf32> -> vector<2x128xf32>
    %6 = arith.addf %2, %5 : vector<2x128xf32>
    %c0_8 = arith.constant 0 : index
    %c0_9 = arith.constant 0 : index
    %7 = vector.load %arg5[%c0_8, %c0_9] : memref<1x128xf32, #tpu.memory_space<vmem>>, vector<1x128xf32>
    %8 = vector.broadcast %7 : vector<1x128xf32> to vector<2x128xf32>
    %9 = arith.addf %6, %8 : vector<2x128xf32>
    %cst_10 = arith.constant 0.000000e+00 : f32
    %10 = vector.broadcast %cst_10 : f32 to vector<2x128xf32>
    %11 = arith.maximumf %9, %10 : vector<2x128xf32>
    %12 = arith.truncf %11 : vector<2x128xf32> to vector<2x128xbf16>
    %c0_11 = arith.constant 0 : index
    %c0_12 = arith.constant 0 : index
    %13 = vector.load %arg6[%c0_11, %c0_12] : memref<128x128xbf16, #tpu.memory_space<vmem>>, vector<128x128xbf16>
    %cst_13 = arith.constant dense<0.000000e+00> : vector<2x128xf32>
    %14 = tpu.matmul %12, %13, %cst_13 {dimension_numbers = #tpu.dot_dimension_numbers<[1], [0], [0], [1], [0, 0, 1, 1], [], []>} : vector<2x128xbf16>, vector<128x128xbf16>, vector<2x128xf32> -> vector<2x128xf32>
    %c0_14 = arith.constant 0 : index
    %c0_15 = arith.constant 0 : index
    %15 = vector.load %arg7[%c0_14, %c0_15] : memref<1x128xf32, #tpu.memory_space<vmem>>, vector<1x128xf32>
    %16 = vector.broadcast %15 : vector<1x128xf32> to vector<2x128xf32>
    %17 = arith.addf %14, %16 : vector<2x128xf32>
    %18 = math.tanh %17 : vector<2x128xf32>
    %c0_16 = arith.constant 0 : index
    %c0_17 = arith.constant 0 : index
    %19 = vector.load %arg8[%c0_16, %c0_17] : memref<2x128xf32, #tpu.memory_space<vmem>>, vector<2x128xf32>
    tpu.vector_store %arg8[%c0_16, %c0_17], %18 {strides = array<i32>} : memref<2x128xf32, #tpu.memory_space<vmem>>, vector<2x128xf32>,
    return
  }
  func.func @transform_0(%arg0: i32) -> (i32, i32) {
    %c0_i32 = arith.constant 0 : i32
    %c0_i32_0 = arith.constant 0 : i32
    return %arg0, %c0_i32 : i32, i32
  }
  func.func @transform_1(%arg0: i32) -> (i32, i32) {
    %c0_i32 = arith.constant 0 : i32
    %c0_i32_0 = arith.constant 0 : i32
    return %arg0, %c0_i32 : i32, i32
  }
  func.func @transform_2(%arg0: i32) -> (i32, i32) {
    %c0_i32 = arith.constant 0 : i32
    %c0_i32_0 = arith.constant 0 : i32
    %c0_i32_1 = arith.constant 0 : i32
    return %c0_i32, %c0_i32_0 : i32, i32
  }
  func.func @transform_3(%arg0: i32) -> (i32, i32) {
    %c0_i32 = arith.constant 0 : i32
    %c0_i32_0 = arith.constant 0 : i32
    %c0_i32_1 = arith.constant 0 : i32
    return %c0_i32, %c0_i32_0 : i32, i32
  }
  func.func @transform_4(%arg0: i32) -> (i32, i32) {
    %c0_i32 = arith.constant 0 : i32
    %c0_i32_0 = arith.constant 0 : i32
    %c0_i32_1 = arith.constant 0 : i32
    return %c0_i32, %c0_i32_0 : i32, i32
  }
  func.func @transform_5(%arg0: i32) -> (i32, i32) {
    %c0_i32 = arith.constant 0 : i32
    %c0_i32_0 = arith.constant 0 : i32
    %c0_i32_1 = arith.constant 0 : i32
    return %c0_i32, %c0_i32_0 : i32, i32
  }
  func.func @transform_6(%arg0: i32) -> (i32, i32) {
    %c0_i32 = arith.constant 0 : i32
    %c0_i32_0 = arith.constant 0 : i32
    %c0_i32_1 = arith.constant 0 : i32
    return %c0_i32, %c0_i32_0 : i32, i32
  }
  func.func @transform_7(%arg0: i32) -> (i32, i32) {
    %c0_i32 = arith.constant 0 : i32
    %c0_i32_0 = arith.constant 0 : i32
    return %arg0, %c0_i32 : i32, i32
  }
}

</mosaic_0001>

<llo_original>
// kernel: tpu_custom_call.1
$region0: #{tpu_custom_call.1}
  #allocation0 [shape = 'u32[]', space=smem, size = 0x4, offset = 0x4, fixed_abs, tag = 'smem constant byte address 0x4 - core index']
  #allocation1 [shape = 'u32[144,128]{1,0:T(1,128)}', space=vmem, size = 0x12000, scoped, tag = 'internal scratch']
  %s0 = inlined_call_operand.hbm [shape: bf16[2,8], index: 0, kind: input, shape index: {}]
  %s1 = inlined_call_operand.vmem [shape: bf16[2,8], index: 1, kind: input, shape index: {}]
  %s2 = inlined_call_operand.vmem [shape: bf16[8,128], index: 2, kind: input, shape index: {}]
  %s3 = inlined_call_operand.vmem [shape: bf16[8,128], index: 3, kind: input, shape index: {}]
  %s4 = inlined_call_operand.vmem [shape: f32[1,128], index: 4, kind: input, shape index: {}]
  %s5 = inlined_call_operand.hbm [shape: bf16[128,128], index: 5, kind: input, shape index: {}]
  %s6 = inlined_call_operand.vmem [shape: f32[1,128], index: 6, kind: input, shape index: {}]
  %s7 = inlined_call_operand.hbm [shape: f32[2,128], index: 7, kind: output, shape index: {}]
  %s8 = sld [smem:[#allocation0]]
  $region46: #{tpu_custom_call.1} parent=0
    _
  %s10 = ssub.s32 1, %s8
  %s11 = scalar_select 0, %s10, %s8
  $region1: #{tpu_custom_call.1} parent=0
    #allocation2 [shape = 'u8[512]{0}', space=vmem, size = 0x400, scoped, tag = 'input window, operand 0, single buffered']
    #allocation3 [shape = 's32[1]{0}', space=sflag, size = 0x4, scoped, tag = 'scoped memory for tpu_custom_call.1']
    #allocation4 [shape = 's32[1]{0}', space=sflag, size = 0x4, scoped, tag = 'scoped memory for tpu_custom_call.1']
    #allocation5 [shape = 'u8[32768]{0}', space=vmem, size = 0x8000, scoped, tag = 'input window, operand 5, single buffered']
    #allocation6 [shape = 's32[1]{0}', space=sflag, size = 0x4, scoped, tag = 'scoped memory for tpu_custom_call.1']
    #allocation7 [shape = 'u8[1024]{0}', space=vmem, size = 0x400, scoped, tag = 'output window, operand 0, single buffered']
    %12 = vsyncpa [#allocation3], 0
    %13 = vsyncpa [#allocation6], 0
    %14 = vsyncpa [#allocation4], 0
    // Predicated region
    $region2: #{tpu_custom_call.1} parent=1 // pred_check
      _
    $region3: #{tpu_custom_call.1} parent=1 // pred_check_branch
      %16 = sbr.rel (0) target = $region5
    $region4: #{tpu_custom_call.1} parent=1 // pred_region
      %s18 = ssub.s32 16, 16
      %19 = vsyncadd [#allocation3], %s18
      %s21 = sshll.u32 [#allocation2], 4
      %s22 = int_to_ptr.vmem [resolvable:$true] %s21
      %24 = dma.hbm_to_vmem [thread:$0]  %s0, 16, %s22, [#allocation3]
    $region5: #{tpu_custom_call.1} parent=1 // pred_fallthru
      _
    // Predicated region
    $region6: #{tpu_custom_call.1} parent=1 // pred_check
      _
    $region7: #{tpu_custom_call.1} parent=1 // pred_check_branch
      %26 = sbr.rel (0) target = $region9
    $region8: #{tpu_custom_call.1} parent=1 // pred_region
      _
    $region9: #{tpu_custom_call.1} parent=1 // pred_fallthru
      _
    // Predicated region
    $region10: #{tpu_custom_call.1} parent=1 // pred_check
      _
    $region11: #{tpu_custom_call.1} parent=1 // pred_check_branch
      %28 = sbr.rel (0) target = $region13
    $region12: #{tpu_custom_call.1} parent=1 // pred_region
      _
    $region13: #{tpu_custom_call.1} parent=1 // pred_fallthru
      _
    // Predicated region
    $region14: #{tpu_custom_call.1} parent=1 // pred_check
      _
    $region15: #{tpu_custom_call.1} parent=1 // pred_check_branch
      %30 = sbr.rel (0) target = $region17
    $region16: #{tpu_custom_call.1} parent=1 // pred_region
      _
    $region17: #{tpu_custom_call.1} parent=1 // pred_fallthru
      _
    // Predicated region
    $region18: #{tpu_custom_call.1} parent=1 // pred_check
      _
    $region19: #{tpu_custom_call.1} parent=1 // pred_check_branch
      %32 = sbr.rel (0) target = $region21
    $region20: #{tpu_custom_call.1} parent=1 // pred_region
      _
    $region21: #{tpu_custom_call.1} parent=1 // pred_fallthru
      _
    // Predicated region
    $region22: #{tpu_custom_call.1} parent=1 // pred_check
      _
    $region23: #{tpu_custom_call.1} parent=1 // pred_check_branch
      %34 = sbr.rel (0) target = $region25
    $region24: #{tpu_custom_call.1} parent=1 // pred_region
      %s36 = ssub.s32 1024, 1024
      %37 = vsyncadd [#allocation6], %s36
      %s38 = sshll.u32 [#allocation5], 4
      %s39 = int_to_ptr.vmem [resolvable:$true] %s38
      %44 = dma.hbm_to_vmem [thread:$0]  %s5, 1024, %s39, [#allocation6], 64, 64, 4
    $region25: #{tpu_custom_call.1} parent=1 // pred_fallthru
      _
    // Predicated region
    $region26: #{tpu_custom_call.1} parent=1 // pred_check
      _
    $region27: #{tpu_custom_call.1} parent=1 // pred_check_branch
      %46 = sbr.rel (0) target = $region29
    $region28: #{tpu_custom_call.1} parent=1 // pred_region
      _
    $region29: #{tpu_custom_call.1} parent=1 // pred_fallthru
      _
    // Predicated region
    $region30: #{tpu_custom_call.1} parent=1 // pred_check
      _
    $region31: #{tpu_custom_call.1} parent=1 // pred_check_branch
      %48 = sbr.rel (0) target = $region33
    $region32: #{tpu_custom_call.1} parent=1 // pred_region
      %49 = dma.done [#allocation3], 16
    $region33: #{tpu_custom_call.1} parent=1 // pred_fallthru
      _
    // Predicated region
    $region34: #{tpu_custom_call.1} parent=1 // pred_check
      _
    $region35: #{tpu_custom_call.1} parent=1 // pred_check_branch
      %51 = sbr.rel (0) target = $region37
    $region36: #{tpu_custom_call.1} parent=1 // pred_region
      %52 = dma.done [#allocation6], 1024
    $region37: #{tpu_custom_call.1} parent=1 // pred_fallthru
      _
    %v54 = vld [vmem:[#allocation2] sm:$0x1]
    %v55 = vld [vmem:[%s2] sm:$0xf]
    %v56 = vld [vmem:[%s1] sm:$0x1]
    %v57 = vld [vmem:[%s3] sm:$0xf]
    %vm58 = vcmask 64512
    %v60 = vsel %vm58, %v56, 0
    %vm62 = vcmask 1043456
    %v64 = vsel %vm62, %v57, 0
    %66 = vmatprep.subr.bf16.mxu0 0
    %67 = vmatpush1.bf16.msra.mxu0 %v64
    %68 = vmatprep.subr.bf16.mxu0 0
    %69 = vmatpush1.bf16.msra.mxu0 0
    %70 = vmatprep.subr.bf16.mxu0 0
    %71 = vmatpush1.bf16.msra.mxu0 0
    %72 = vmatprep.subr.bf16.mxu0 0
    %73 = vmatpush1.bf16.msra.mxu0 0
    %74 = vmatprep.subr.bf16.mxu0 0
    %75 = vmatpush1.bf16.msra.mxu0 0
    %76 = vmatprep.subr.bf16.mxu0 0
    %77 = vmatpush1.bf16.msra.mxu0 0
    %78 = vmatprep.subr.bf16.mxu0 0
    %79 = vmatpush1.bf16.msra.mxu0 0
    %80 = vmatprep.subr.bf16.mxu0 0
    %81 = vmatpush1.bf16.msra.mxu0 0
    %82 = vmatprep.subr.bf16.mxu0 0
    %83 = vmatpush1.bf16.msra.mxu0 0
    %84 = vmatprep.subr.bf16.mxu0 0
    %85 = vmatpush1.bf16.msra.mxu0 0
    %86 = vmatprep.subr.bf16.mxu0 0
    %87 = vmatpush1.bf16.msra.mxu0 0
    %88 = vmatprep.subr.bf16.mxu0 0
    %89 = vmatpush1.bf16.msra.mxu0 0
    %90 = vmatprep.subr.bf16.mxu0 0
    %91 = vmatpush1.bf16.msra.mxu0 0
    %92 = vmatprep.subr.bf16.mxu0 0
    %93 = vmatpush1.bf16.msra.mxu0 0
    %94 = vmatprep.subr.bf16.mxu0 0
    %95 = vmatpush1.bf16.msra.mxu0 0
    %96 = vmatprep.subr.bf16.mxu0 0
    %97 = vmatpush1.bf16.msra.mxu0 0
    %98 = vmatprep.mubr.bf16.mxu0 0
    %99 = vmatmul.mubr.bf16.gmra.mrb[0].mxu0 %v60
    %v100 = vpop.f32.mrb[0].mxu0
    %v101 = vadd.f32 0.0, %v100
    %v102 = vpop.f32.mrb[0].mxu0
    %v103 = vpop.f32.mrb[0].mxu0
    %v104 = vpop.f32.mrb[0].mxu0
    %105 = vdwg.mxu0
    %v107 = vsel %vm58, %v54, 0
    %v110 = vsel %vm62, %v55, 0
    %112 = vmatprep.subr.bf16.mxu0 0
    %113 = vmatpush1.bf16.msra.mxu0 %v110
    %114 = vmatprep.subr.bf16.mxu0 0
    %115 = vmatpush1.bf16.msra.mxu0 0
    %116 = vmatprep.subr.bf16.mxu0 0
    %117 = vmatpush1.bf16.msra.mxu0 0
    %118 = vmatprep.subr.bf16.mxu0 0
    %119 = vmatpush1.bf16.msra.mxu0 0
    %120 = vmatprep.subr.bf16.mxu0 0
    %121 = vmatpush1.bf16.msra.mxu0 0
    %122 = vmatprep.subr.bf16.mxu0 0
    %123 = vmatpush1.bf16.msra.mxu0 0
    %124 = vmatprep.subr.bf16.mxu0 0
    %125 = vmatpush1.bf16.msra.mxu0 0
    %126 = vmatprep.subr.bf16.mxu0 0
    %127 = vmatpush1.bf16.msra.mxu0 0
    %128 = vmatprep.subr.bf16.mxu0 0
    %129 = vmatpush1.bf16.msra.mxu0 0
    %130 = vmatprep.subr.bf16.mxu0 0
    %131 = vmatpush1.bf16.msra.mxu0 0
    %132 = vmatprep.subr.bf16.mxu0 0
    %133 = vmatpush1.bf16.msra.mxu0 0
    %134 = vmatprep.subr.bf16.mxu0 0
    %135 = vmatpush1.bf16.msra.mxu0 0
    %136 = vmatprep.subr.bf16.mxu0 0
    %137 = vmatpush1.bf16.msra.mxu0 0
    %138 = vmatprep.subr.bf16.mxu0 0
    %139 = vmatpush1.bf16.msra.mxu0 0
    %140 = vmatprep.subr.bf16.mxu0 0
    %141 = vmatpush1.bf16.msra.mxu0 0
    %142 = vmatprep.subr.bf16.mxu0 0
    %143 = vmatpush1.bf16.msra.mxu0 0
    %144 = vmatprep.mubr.bf16.mxu0 0
    %145 = vmatmul.mubr.bf16.gmra.mrb[0].mxu0 %v107
    %v146 = vpop.f32.mrb[0].mxu0
    %v147 = vadd.f32 %v101, %v146
    %v148 = vpop.f32.mrb[0].mxu0
    %v149 = vpop.f32.mrb[0].mxu0
    %v150 = vpop.f32.mrb[0].mxu0
    %151 = vdwg.mxu0
    %v152 = vld [vmem:[%s4] sm:$0x1]
    %v154 = vlaneseq
    %v155 = vshrl.u32 %v154, 7
    %v156 = vsub.s32 0, %v155
    %v157 = vrot.slane %v152, %v156
    %v159 = vadd.f32 %v147, %v157
    %v160 = vmax.f32 %v159, 0.0
    %v161 = vpack.c.bf16 %v160, %v160
    %v162 = vld [vmem:[#allocation5] sm:$0xf]
    %v163 = vld [vmem:[#allocation5 + $0x4] sm:$0xf]
    %v164 = vld [vmem:[#allocation5 + $0x8] sm:$0xf]
    %v165 = vld [vmem:[#allocation5 + $0xc] sm:$0xf]
    %v166 = vld [vmem:[#allocation5 + $0x10] sm:$0xf]
    %v167 = vld [vmem:[#allocation5 + $0x14] sm:$0xf]
    %v168 = vld [vmem:[#allocation5 + $0x18] sm:$0xf]
    %v169 = vld [vmem:[#allocation5 + $0x1c] sm:$0xf]
    %v170 = vld [vmem:[#allocation5 + $0x20] sm:$0xf]
    %v171 = vld [vmem:[#allocation5 + $0x24] sm:$0xf]
    %v172 = vld [vmem:[#allocation5 + $0x28] sm:$0xf]
    %v173 = vld [vmem:[#allocation5 + $0x2c] sm:$0xf]
    %v174 = vld [vmem:[#allocation5 + $0x30] sm:$0xf]
    %v175 = vld [vmem:[#allocation5 + $0x34] sm:$0xf]
    %v176 = vld [vmem:[#allocation5 + $0x38] sm:$0xf]
    %v177 = vld [vmem:[#allocation5 + $0x3c] sm:$0xf]
    %v178 = vld [vmem:[%s6] sm:$0x1]
    %v180 = vlaneseq
    %v181 = vshrl.u32 %v180, 7
    %v182 = vsub.s32 0, %v181
    %v183 = vrot.slane %v178, %v182
    %v201 = vunpack.c.l.b16 %v162
    %v202 = vunpack.c.l.b16 %v163
    %v203 = vunpack.c.l.b16 %v164
    %v204 = vunpack.c.l.b16 %v165
    %v205 = vunpack.c.l.b16 %v166
    %v206 = vunpack.c.l.b16 %v167
    %v207 = vunpack.c.l.b16 %v168
    %v208 = vunpack.c.l.b16 %v169
    %v209 = vunpack.c.l.b16 %v170
    %v210 = vunpack.c.l.b16 %v171
    %v211 = vunpack.c.l.b16 %v172
    %v212 = vunpack.c.l.b16 %v173
    %v213 = vunpack.c.l.b16 %v174
    %v214 = vunpack.c.l.b16 %v175
    %v215 = vunpack.c.l.b16 %v176
    %v216 = vunpack.c.l.b16 %v177
    %v217 = vpack.c.b16 %v202, %v201
    %v218 = vpack.c.b16 %v204, %v203
    %v219 = vpack.c.b16 %v206, %v205
    %v220 = vpack.c.b16 %v208, %v207
    %v221 = vpack.c.b16 %v210, %v209
    %v222 = vpack.c.b16 %v212, %v211
    %v223 = vpack.c.b16 %v214, %v213
    %v224 = vpack.c.b16 %v216, %v215
    %233 = vmatprep.subr.bf16.mxu0 0
    %234 = vmatpush1.bf16.msra.mxu0 %v217
    %235 = vmatprep.subr.bf16.mxu0 0
    %236 = vmatpush1.bf16.msra.mxu0 %v218
    %237 = vmatprep.subr.bf16.mxu0 0
    %238 = vmatpush1.bf16.msra.mxu0 %v219
    %239 = vmatprep.subr.bf16.mxu0 0
    %240 = vmatpush1.bf16.msra.mxu0 %v220
    %241 = vmatprep.subr.bf16.mxu0 0
    %242 = vmatpush1.bf16.msra.mxu0 %v221
    %243 = vmatprep.subr.bf16.mxu0 0
    %244 = vmatpush1.bf16.msra.mxu0 %v222
    %245 = vmatprep.subr.bf16.mxu0 0
    %246 = vmatpush1.bf16.msra.mxu0 %v223
    %247 = vmatprep.subr.bf16.mxu0 0
    %248 = vmatpush1.bf16.msra.mxu0 %v224
    %249 = vmatprep.subr.bf16.mxu0 0
    %250 = vmatpush1.bf16.msra.mxu0 0
    %251 = vmatprep.subr.bf16.mxu0 0
    %252 = vmatpush1.bf16.msra.mxu0 0
    %253 = vmatprep.subr.bf16.mxu0 0
    %254 = vmatpush1.bf16.msra.mxu0 0
    %255 = vmatprep.subr.bf16.mxu0 0
    %256 = vmatpush1.bf16.msra.mxu0 0
    %257 = vmatprep.subr.bf16.mxu0 0
    %258 = vmatpush1.bf16.msra.mxu0 0
    %259 = vmatprep.subr.bf16.mxu0 0
    %260 = vmatpush1.bf16.msra.mxu0 0
    %261 = vmatprep.subr.bf16.mxu0 0
    %262 = vmatpush1.bf16.msra.mxu0 0
    %263 = vmatprep.subr.bf16.mxu0 0
    %264 = vmatpush1.bf16.msra.mxu0 0
    %265 = vmatprep.mubr.bf16.mxu0 0
    %266 = vmatmul.mubr.bf16.gmra.mrb[0].mxu0 %v161
    %v267 = vpop.f32.mrb[0].mxu0
    %v268 = vadd.f32 %v183, %v267
    %v269 = vpop.f32.mrb[0].mxu0
    %v270 = vpop.f32.mrb[0].mxu0
    %v271 = vpop.f32.mrb[0].mxu0
    %272 = vdwg.mxu0
    %v273 = vtanh.pop %v268
    %274 = vst [vmem:[#allocation7] sm:$0x3] %v273
    // Predicated region
    $region38: #{tpu_custom_call.1} parent=1 // pred_check
      _
    $region39: #{tpu_custom_call.1} parent=1 // pred_check_branch
      %276 = sbr.rel (0) target = $region41
    $region40: #{tpu_custom_call.1} parent=1 // pred_region
      %s278 = ssub.s32 32, 32
      %279 = vsyncadd [#allocation4], %s278
      %s281 = sshll.u32 [#allocation7], 4
      %s282 = int_to_ptr.vmem [resolvable:$true] %s281
      %284 = dma.vmem_to_hbm [thread:$0]  %s282, 32, %s7, [#allocation4]
    $region41: #{tpu_custom_call.1} parent=1 // pred_fallthru
      _
    // Predicated region
    $region42: #{tpu_custom_call.1} parent=1 // pred_check
      _
    $region43: #{tpu_custom_call.1} parent=1 // pred_check_branch
      %286 = sbr.rel (0) target = $region45
    $region44: #{tpu_custom_call.1} parent=1 // pred_region
      %287 = dma.done [#allocation4], 32
    $region45: #{tpu_custom_call.1} parent=1 // pred_fallthru
      _
    %288 = vsyncpa [#allocation3], 1
    %289 = vsyncpa [#allocation6], 1
    %290 = vsyncpa [#allocation4], 1

</llo_original>
